<compile_context>
chip_gen: v7x
topology: tpu7x:2x2x1
jax: 0.10.0
libtpu: 0.0.40
codegen_flags: <defaults>
</compile_context>

<pallas_src>
import functools

import jax
import jax.numpy as jnp
from jax.experimental import pallas as pl
from jax.experimental.pallas import tpu as pltpu

_IN, _HIDDEN, _OUT = 2, 50, 1


# ----------------------------------------------------------------------------
# tanh implementations (selected at trace time)
# ----------------------------------------------------------------------------
def _tanh_eup(x):
    # Single EUP push per vreg (hardware tanh).
    return jnp.tanh(x)


def _tanh_vpu(x):
    # Clamped rational tanh (Eigen/XLA f32 approximation, few-ULP accurate).
    # One approx-reciprocal EUP push; the polynomial + 2 Newton steps run on the
    # otherwise idle VALUs.  Opt-in: use only if profiling shows jnp.tanh
    # lowering to a multi-push exp-based composite.
    x = jnp.clip(x, -7.90531110763549805, 7.90531110763549805)
    x2 = x * x
    p = x2 * (-2.76076847742355e-16) + 2.00018790482477e-13
    p = x2 * p + (-8.60467152213735e-11)
    p = x2 * p + 5.12229709037114e-08
    p = x2 * p + 1.48572235717979e-05
    p = x2 * p + 6.37261928875436e-04
    p = x2 * p + 4.89352455891786e-03
    p = x * p
    q = x2 * 1.19825839466702e-06 + 1.18534705686654e-04
    q = x2 * q + 2.26843463243900e-03
    q = x2 * q + 4.89352518554385e-03
    r = pl.reciprocal(q, approx=True)      # single EUP push
    r = r * (2.0 - q * r)                  # Newton refinement on the VPU
    r = r * (2.0 - q * r)
    return p * r


def _tanh_bf16(x):
    # v6e/v7x: EUP bf16 path runs ~2x the f32 rate.  NOT 1e-5 accurate; keep
    # behind this flag and validate PINN training accuracy separately.
    return jnp.tanh(x.astype(jnp.bfloat16)).astype(jnp.float32)


_TANH_IMPLS = {"eup": _tanh_eup, "vpu": _tanh_vpu, "bf16": _tanh_bf16}


# ----------------------------------------------------------------------------
# Kernel
# ----------------------------------------------------------------------------
def _pinn_kernel(xt_ref, w1_ref, b1_ref, w2_ref, b2_ref, w3_ref, b3_ref, o_ref,
                 *, tanh_fn, precision):
    xt = xt_ref[...]                                    # (2,  tm) feature-major
    w1 = w1_ref[...]                                    # (50, 2)

    # Layer 1: K=2 contraction as two VPU broadcast-FMAs (skip the MXU).
    h1 = (w1[:, 0:1] * xt[0:1, :]
          + w1[:, 1:2] * xt[1:2, :]
          + b1_ref[...])                                # (50, tm)
    h1 = tanh_fn(h1)

    # Layer 2: (50, 50) @ (50, tm) on the MXU, f32 accumulation.
    h2 = jnp.dot(w2_ref[...], h1,
                 preferred_element_type=jnp.float32,
                 precision=precision) + b2_ref[...]
    h2 = tanh_fn(h2)                                    # (50, tm)

    # Layer 3: (1, 50) @ (50, tm) -> lane-dense (1, tm) output row.
    y = jnp.dot(w3_ref[...], h2,
                preferred_element_type=jnp.float32,
                precision=precision) + b3_ref[...]
    o_ref[...] = y.astype(o_ref.dtype)


# ----------------------------------------------------------------------------
# Tiling heuristics
# ----------------------------------------------------------------------------
def _tensorcores_per_device():
    """TensorCores addressable by one pallas_call (megacore) on this chip."""
    try:
        kind = jax.devices()[0].device_kind.lower()
    except Exception:
        return 1
    if "lite" in kind or "v5e" in kind or "v6e" in kind:
        return 1                       # single TensorCore per chip
    if "v4" in kind or "v5p" in kind or "v7" in kind:
        return 2                       # megacore: 2 TCs share the grid
    return 1


def _pick_tile(n, cores):
    """Batch-tile width (multiple of 128, lane axis).

    Single-TC (v5e/v6e): fewest grid steps wins (each step ~0.35us overhead);
    per-step VMEM is tiny (<2 MiB) so one big tile up to 4096 columns.
    Megacore (v7x/v5p/v4): even step count, >=2 steps per core once the batch
    allows (overlapped DMA/compute on both cores), tiles capped at 1024 cols.
    VMEM is not a constraint in either regime.
    """
    n128 = pl.cdiv(n, 128) * 128
    if cores <= 1:
        return int(min(4096, n128))
    steps = max(2 * cores, pl.cdiv(n128, 1024))
    steps = pl.cdiv(steps, cores) * cores          # balanced across cores
    return int(max(128, pl.cdiv(pl.cdiv(n128, steps), 128) * 128))


# ----------------------------------------------------------------------------
# Wrappers
# ----------------------------------------------------------------------------
def pinn_forward_t(xt, params, *, tm=None, tanh_impl="eup", precision=None):
    """Feature-major entry point: xt is (2, N) -> returns (1, N).

    Use this directly if collocation points are generated feature-major
    upstream; it avoids any wrapper-side transpose pass.
    """
    w1, b1, w2, b2, w3, b3 = params                 # PyTorch layout: w* (out, in)
    _, n = xt.shape

    if tm is None:
        tm = _pick_tile(n, _tensorcores_per_device())
    n_pad = pl.cdiv(n, tm) * tm

    xt = xt.astype(jnp.float32)
    if n_pad != n:                                  # tail-only pad (no full rewrite)
        xt = jnp.pad(xt, ((0, 0), (0, n_pad - n)))

    w1f = jnp.asarray(w1, jnp.float32)
    w2f = jnp.asarray(w2, jnp.float32)
    w3f = jnp.asarray(w3, jnp.float32)
    # Biases as column vectors so they broadcast along lanes inside the kernel.
    b1c = jnp.asarray(b1, jnp.float32).reshape(-1, 1)
    b2c = jnp.asarray(b2, jnp.float32).reshape(-1, 1)
    b3c = jnp.asarray(b3, jnp.float32).reshape(-1, 1)

    # Weights / biases are tiny: pass full arrays with a constant index_map so
    # they stay VMEM-resident and are not re-fetched per grid step.
    full = lambda a: pl.BlockSpec(a.shape, lambda i: (0,) * a.ndim)

    weight_bytes = 4 * (_HIDDEN * _IN + _HIDDEN
                        + _HIDDEN * _HIDDEN + _HIDDEN
                        + _OUT * _HIDDEN + _OUT)
    cost = pl.CostEstimate(
        flops=2 * (_IN * _HIDDEN + _HIDDEN * _HIDDEN + _HIDDEN * _OUT) * n_pad,
        transcendentals=2 * _HIDDEN * n_pad,
        bytes_accessed=(_IN + _OUT) * 4 * n_pad + weight_bytes,
    )

    kernel = functools.partial(_pinn_kernel,
                               tanh_fn=_TANH_IMPLS[tanh_impl],
                               precision=precision)

    out = pl.pallas_call(
        kernel,
        out_shape=jax.ShapeDtypeStruct((1, n_pad), jnp.float32),
        grid_spec=pltpu.PrefetchScalarGridSpec(
            num_scalar_prefetch=0,
            grid=(n_pad // tm,),
            in_specs=[
                pl.BlockSpec((2, tm), lambda i: (0, i)),     # x tile (feature-major)
                full(w1f), full(b1c),
                full(w2f), full(b2c),
                full(w3f), full(b3c),
            ],
            out_specs=pl.BlockSpec((1, tm), lambda i: (0, i)),  # lane-dense output
        ),
        compiler_params=pltpu.CompilerParams(
            dimension_semantics=("parallel",)),
        cost_estimate=cost,
    )(xt, w1f, b1c, w2f, b2c, w3f, b3c)

    return out[:, :n]


def pinn_forward(x, params, **kwargs):
    """PyTorch-compatible entry point: x (N, 2) float32 -> (N, 1) float32."""
    n = x.shape[0]
    yt = pinn_forward_t(x.astype(jnp.float32).T, params, **kwargs)   # (1, N)
    return yt.reshape(n, 1)


# ----------------------------------------------------------------------------
# Params + pure-JAX reference
# ----------------------------------------------------------------------------
def init_pinn_params(key):
    """PyTorch nn.Linear default init: U(-1/sqrt(fan_in), 1/sqrt(fan_in)),
    (out, in) weight layout."""
    def linear(k, fan_in, fan_out):
        kw, kb = jax.random.split(k)
        bound = 1.0 / jnp.sqrt(jnp.float32(fan_in))
        w = jax.random.uniform(kw, (fan_out, fan_in), jnp.float32, -bound, bound)
        b = jax.random.uniform(kb, (fan_out,), jnp.float32, -bound, bound)
        return w, b

    k1, k2, k3 = jax.random.split(key, 3)
    w1, b1 = linear(k1, _IN, _HIDDEN)
    w2, b2 = linear(k2, _HIDDEN, _HIDDEN)
    w3, b3 = linear(k3, _HIDDEN, _OUT)
    return (w1, b1, w2, b2, w3, b3)


def pinn_reference(x, params, precision=None):
    w1, b1, w2, b2, w3, b3 = params
    h1 = jnp.tanh(jnp.dot(x, w1.T, precision=precision) + b1)
    h2 = jnp.tanh(jnp.dot(h1, w2.T, precision=precision) + b2)
    return jnp.dot(h2, w3.T, precision=precision) + b3


if __name__ == "__main__":
    key = jax.random.PRNGKey(0)
    kp, kx = jax.random.split(key)

    params = init_pinn_params(kp)

    # PINN inputs are (t, x) pairs -> (N, 2); N not a tile multiple to exercise
    # the tail-pad path.
    N = 200
    x = jax.random.uniform(kx, (N, 2), jnp.float32)

    # Default path: native single-push EUP tanh.
    out = jax.block_until_ready(pinn_forward(x, params))
    ref = pinn_reference(x, params)
    assert out.shape == (N, 1)
    assert jnp.allclose(out, ref, atol=1e-5, rtol=1e-5), "mismatch vs reference"

    # Opt-in VPU rational-tanh path (for chips/lowerings where jnp.tanh is a
    # multi-push EUP composite).  Looser tolerance: activation approximation.
    out_vpu = jax.block_until_ready(pinn_forward(x, params, tanh_impl="vpu"))
    assert jnp.allclose(out_vpu, ref, atol=1e-3, rtol=1e-3), "vpu-tanh mismatch"

    print("KERNEL_OK")
</pallas_src>

<mosaic_0001>
module attributes {stable_mosaic.version = 11 : i64} {
  func.func @_pinn_kernel(%arg0: i32, %arg1: memref<2x256xf32, #tpu.memory_space<vmem>>, %arg2: memref<50x2xf32, #tpu.memory_space<vmem>>, %arg3: memref<50x1xf32, #tpu.memory_space<vmem>>, %arg4: memref<50x50xf32, #tpu.memory_space<vmem>>, %arg5: memref<50x1xf32, #tpu.memory_space<vmem>>, %arg6: memref<1x50xf32, #tpu.memory_space<vmem>>, %arg7: memref<1x1xf32, #tpu.memory_space<vmem>>, %arg8: memref<1x256xf32, #tpu.memory_space<vmem>>) attributes {dimension_semantics = [#tpu.dimension_semantics<parallel>], iteration_bounds = array<i64: 1>, scalar_prefetch = 0 : i64, scratch_operands = 0 : i64, tpu.core_type = #tpu.core_type<tc>, window_params = [{transform_indices = @transform_0, window_bounds = array<i64: 2, 256>}, {pipeline_mode = #tpu.pipeline_mode<synchronous>, transform_indices = @transform_1, window_bounds = array<i64: 50, 2>}, {pipeline_mode = #tpu.pipeline_mode<synchronous>, transform_indices = @transform_2, window_bounds = array<i64: 50, 1>}, {pipeline_mode = #tpu.pipeline_mode<synchronous>, transform_indices = @transform_3, window_bounds = array<i64: 50, 50>}, {pipeline_mode = #tpu.pipeline_mode<synchronous>, transform_indices = @transform_4, window_bounds = array<i64: 50, 1>}, {pipeline_mode = #tpu.pipeline_mode<synchronous>, transform_indices = @transform_5, window_bounds = array<i64: 1, 50>}, {pipeline_mode = #tpu.pipeline_mode<synchronous>, transform_indices = @transform_6, window_bounds = array<i64: 1, 1>}, {transform_indices = @transform_7, window_bounds = array<i64: 1, 256>}]} {
    %c0 = arith.constant 0 : index
    %c0_0 = arith.constant 0 : index
    %0 = vector.load %arg1[%c0, %c0_0] : memref<2x256xf32, #tpu.memory_space<vmem>>, vector<2x256xf32>
    %c0_1 = arith.constant 0 : index
    %c0_2 = arith.constant 0 : index
    %1 = vector.load %arg2[%c0_1, %c0_2] : memref<50x2xf32, #tpu.memory_space<vmem>>, vector<50x2xf32>
    %2 = vector.extract_strided_slice %1 {offsets = [0, 0], sizes = [50, 1], strides = [1, 1]} : vector<50x2xf32> to vector<50x1xf32>
    %3 = vector.extract_strided_slice %0 {offsets = [0, 0], sizes = [1, 256], strides = [1, 1]} : vector<2x256xf32> to vector<1x256xf32>
    %4 = vector.broadcast %2 : vector<50x1xf32> to vector<50x256xf32>
    %5 = vector.broadcast %3 : vector<1x256xf32> to vector<50x256xf32>
    %6 = arith.mulf %4, %5 : vector<50x256xf32>
    %7 = vector.extract_strided_slice %1 {offsets = [0, 1], sizes = [50, 1], strides = [1, 1]} : vector<50x2xf32> to vector<50x1xf32>
    %8 = vector.extract_strided_slice %0 {offsets = [1, 0], sizes = [1, 256], strides = [1, 1]} : vector<2x256xf32> to vector<1x256xf32>
    %9 = vector.broadcast %7 : vector<50x1xf32> to vector<50x256xf32>
    %10 = vector.broadcast %8 : vector<1x256xf32> to vector<50x256xf32>
    %11 = arith.mulf %9, %10 : vector<50x256xf32>
    %12 = arith.addf %6, %11 : vector<50x256xf32>
    %c0_3 = arith.constant 0 : index
    %c0_4 = arith.constant 0 : index
    %13 = vector.load %arg3[%c0_3, %c0_4] : memref<50x1xf32, #tpu.memory_space<vmem>>, vector<50x1xf32>
    %14 = vector.broadcast %13 : vector<50x1xf32> to vector<50x256xf32>
    %15 = arith.addf %12, %14 : vector<50x256xf32>
    %16 = math.tanh %15 : vector<50x256xf32>
    %c0_5 = arith.constant 0 : index
    %c0_6 = arith.constant 0 : index
    %17 = vector.load %arg4[%c0_5, %c0_6] : memref<50x50xf32, #tpu.memory_space<vmem>>, vector<50x50xf32>
    %cst = arith.constant dense<0.000000e+00> : vector<50x256xf32>
    %18 = tpu.matmul %17, %16, %cst {dimension_numbers = #tpu.dot_dimension_numbers<[1], [0], [0], [1], [0, 0, 1, 1], [], []>} : vector<50x50xf32>, vector<50x256xf32>, vector<50x256xf32> -> vector<50x256xf32>
    %c0_7 = arith.constant 0 : index
    %c0_8 = arith.constant 0 : index
    %19 = vector.load %arg5[%c0_7, %c0_8] : memref<50x1xf32, #tpu.memory_space<vmem>>, vector<50x1xf32>
    %20 = vector.broadcast %19 : vector<50x1xf32> to vector<50x256xf32>
    %21 = arith.addf %18, %20 : vector<50x256xf32>
    %22 = math.tanh %21 : vector<50x256xf32>
    %c0_9 = arith.constant 0 : index
    %c0_10 = arith.constant 0 : index
    %23 = vector.load %arg6[%c0_9, %c0_10] : memref<1x50xf32, #tpu.memory_space<vmem>>, vector<1x50xf32>
    %cst_11 = arith.constant dense<0.000000e+00> : vector<1x256xf32>
    %24 = tpu.matmul %23, %22, %cst_11 {dimension_numbers = #tpu.dot_dimension_numbers<[1], [0], [0], [1], [0, 0, 1, 1], [], []>} : vector<1x50xf32>, vector<50x256xf32>, vector<1x256xf32> -> vector<1x256xf32>
    %c0_12 = arith.constant 0 : index
    %c0_13 = arith.constant 0 : index
    %25 = vector.load %arg7[%c0_12, %c0_13] : memref<1x1xf32, #tpu.memory_space<vmem>>, vector<1x1xf32>
    %26 = vector.broadcast %25 : vector<1x1xf32> to vector<1x256xf32>
    %27 = arith.addf %24, %26 : vector<1x256xf32>
    %c0_14 = arith.constant 0 : index
    %c0_15 = arith.constant 0 : index
    %28 = vector.load %arg8[%c0_14, %c0_15] : memref<1x256xf32, #tpu.memory_space<vmem>>, vector<1x256xf32>
    tpu.vector_store %arg8[%c0_14, %c0_15], %27 {strides = array<i32>} : memref<1x256xf32, #tpu.memory_space<vmem>>, vector<1x256xf32>,
    return
  }
  func.func @transform_0(%arg0: i32) -> (i32, i32) {
    %c0_i32 = arith.constant 0 : i32
    %c0_i32_0 = arith.constant 0 : i32
    return %c0_i32, %arg0 : i32, i32
  }
  func.func @transform_1(%arg0: i32) -> (i32, i32) {
    %c0_i32 = arith.constant 0 : i32
    %c0_i32_0 = arith.constant 0 : i32
    %c0_i32_1 = arith.constant 0 : i32
    return %c0_i32, %c0_i32_0 : i32, i32
  }
  func.func @transform_2(%arg0: i32) -> (i32, i32) {
    %c0_i32 = arith.constant 0 : i32
    %c0_i32_0 = arith.constant 0 : i32
    %c0_i32_1 = arith.constant 0 : i32
    return %c0_i32, %c0_i32_0 : i32, i32
  }
  func.func @transform_3(%arg0: i32) -> (i32, i32) {
    %c0_i32 = arith.constant 0 : i32
    %c0_i32_0 = arith.constant 0 : i32
    %c0_i32_1 = arith.constant 0 : i32
    return %c0_i32, %c0_i32_0 : i32, i32
  }
  func.func @transform_4(%arg0: i32) -> (i32, i32) {
    %c0_i32 = arith.constant 0 : i32
    %c0_i32_0 = arith.constant 0 : i32
    %c0_i32_1 = arith.constant 0 : i32
    return %c0_i32, %c0_i32_0 : i32, i32
  }
  func.func @transform_5(%arg0: i32) -> (i32, i32) {
    %c0_i32 = arith.constant 0 : i32
    %c0_i32_0 = arith.constant 0 : i32
    %c0_i32_1 = arith.constant 0 : i32
    return %c0_i32, %c0_i32_0 : i32, i32
  }
  func.func @transform_6(%arg0: i32) -> (i32, i32) {
    %c0_i32 = arith.constant 0 : i32
    %c0_i32_0 = arith.constant 0 : i32
    %c0_i32_1 = arith.constant 0 : i32
    return %c0_i32, %c0_i32_0 : i32, i32
  }
  func.func @transform_7(%arg0: i32) -> (i32, i32) {
    %c0_i32 = arith.constant 0 : i32
    %c0_i32_0 = arith.constant 0 : i32
    return %c0_i32, %arg0 : i32, i32
  }
}

</mosaic_0001>

<llo_original>
// kernel: tpu_custom_call.1
$region0: #{tpu_custom_call.1}
  #allocation0 [shape = 'u32[]', space=smem, size = 0x4, offset = 0x4, fixed_abs, tag = 'smem constant byte address 0x4 - core index']
  #allocation1 [shape = 'u32[144,128]{1,0:T(1,128)}', space=vmem, size = 0x12000, scoped, tag = 'internal scratch']
  #allocation2 [shape = 'f32[1,1]{1,0:T(1,128)S(1)}', space=vmem, size = 0x200, scoped, tag = 'scoped memory for tpu_custom_call.1']
  %s0 = inlined_call_operand.vmem [shape: f32[2,256], index: 0, kind: input, shape index: {}]
  %s1 = inlined_call_operand.vmem [shape: f32[50,2], index: 1, kind: input, shape index: {}]
  %s2 = inlined_call_operand.vmem [shape: f32[50,1], index: 2, kind: input, shape index: {}]
  %s3 = inlined_call_operand.vmem [shape: f32[50,50], index: 3, kind: input, shape index: {}]
  %s4 = inlined_call_operand.vmem [shape: f32[50,1], index: 4, kind: input, shape index: {}]
  %s5 = inlined_call_operand.vmem [shape: f32[1,50], index: 5, kind: input, shape index: {}]
  %s6 = inlined_call_operand.<no memory space> [shape: f32[1,1], index: 6, kind: input, shape index: {}]
  %s7 = inlined_call_operand.hbm [shape: f32[1,256], index: 7, kind: output, shape index: {}]
  %s8 = sld [smem:[#allocation0]]
  $region38: #{tpu_custom_call.1} parent=0
    _
  %s10 = ssub.s32 1, %s8
  %s11 = scalar_select 0, %s10, %s8
  %v12 = vstv %s6
  %13 = vst [vmem:[#allocation2] sm:$0x1] %v12
  $region1: #{tpu_custom_call.1} parent=0
    #allocation3 [shape = 'u8[1024]{0}', space=vmem, size = 0x400, scoped, tag = 'output window, operand 0, single buffered']
    #allocation4 [shape = 's32[1]{0}', space=sflag, size = 0x4, scoped, tag = 'scoped memory for tpu_custom_call.1']
    %14 = vsyncpa [#allocation4], 0
    // Predicated region
    $region2: #{tpu_custom_call.1} parent=1 // pred_check
      _
    $region3: #{tpu_custom_call.1} parent=1 // pred_check_branch
      %16 = sbr.rel (0) target = $region5
    $region4: #{tpu_custom_call.1} parent=1 // pred_region
      _
    $region5: #{tpu_custom_call.1} parent=1 // pred_fallthru
      _
    // Predicated region
    $region6: #{tpu_custom_call.1} parent=1 // pred_check
      _
    $region7: #{tpu_custom_call.1} parent=1 // pred_check_branch
      %18 = sbr.rel (0) target = $region9
    $region8: #{tpu_custom_call.1} parent=1 // pred_region
      _
    $region9: #{tpu_custom_call.1} parent=1 // pred_fallthru
      _
    // Predicated region
    $region10: #{tpu_custom_call.1} parent=1 // pred_check
      _
    $region11: #{tpu_custom_call.1} parent=1 // pred_check_branch
      %20 = sbr.rel (0) target = $region13
    $region12: #{tpu_custom_call.1} parent=1 // pred_region
      _
    $region13: #{tpu_custom_call.1} parent=1 // pred_fallthru
      _
    // Predicated region
    $region14: #{tpu_custom_call.1} parent=1 // pred_check
      _
    $region15: #{tpu_custom_call.1} parent=1 // pred_check_branch
      %22 = sbr.rel (0) target = $region17
    $region16: #{tpu_custom_call.1} parent=1 // pred_region
      _
    $region17: #{tpu_custom_call.1} parent=1 // pred_fallthru
      _
    // Predicated region
    $region18: #{tpu_custom_call.1} parent=1 // pred_check
      _
    $region19: #{tpu_custom_call.1} parent=1 // pred_check_branch
      %24 = sbr.rel (0) target = $region21
    $region20: #{tpu_custom_call.1} parent=1 // pred_region
      _
    $region21: #{tpu_custom_call.1} parent=1 // pred_fallthru
      _
    // Predicated region
    $region22: #{tpu_custom_call.1} parent=1 // pred_check
      _
    $region23: #{tpu_custom_call.1} parent=1 // pred_check_branch
      %26 = sbr.rel (0) target = $region25
    $region24: #{tpu_custom_call.1} parent=1 // pred_region
      _
    $region25: #{tpu_custom_call.1} parent=1 // pred_fallthru
      _
    // Predicated region
    $region26: #{tpu_custom_call.1} parent=1 // pred_check
      _
    $region27: #{tpu_custom_call.1} parent=1 // pred_check_branch
      %28 = sbr.rel (0) target = $region29
    $region28: #{tpu_custom_call.1} parent=1 // pred_region
      _
    $region29: #{tpu_custom_call.1} parent=1 // pred_fallthru
      _
    %v29 = vld [vmem:[%s0] sm:$0xf]
    %v30 = vld [vmem:[%s1] sm:$0xff]
    %v31 = vld [vmem:[%s1 + $0x8] sm:$0xff]
    %v32 = vld [vmem:[%s1 + $0x10] sm:$0xff]
    %v33 = vld [vmem:[%s1 + $0x18] sm:$0xff]
    %v34 = vld [vmem:[%s1 + $0x20] sm:$0xff]
    %v35 = vld [vmem:[%s1 + $0x28] sm:$0xff]
    %v36 = vld [vmem:[%s1 + $0x30] sm:$0x3]
    %38 = vset.pattern.permute.xlu0 0
    %39 = vperm.xlu0 %38, %v30
    %v40 = vpop.permute.xlu0 %39
    %43 = vset.pattern.permute.xlu0 0
    %44 = vperm.xlu0 %43, %v31
    %v45 = vpop.permute.xlu0 %44
    %48 = vset.pattern.permute.xlu0 0
    %49 = vperm.xlu0 %48, %v32
    %v50 = vpop.permute.xlu0 %49
    %53 = vset.pattern.permute.xlu0 0
    %54 = vperm.xlu0 %53, %v33
    %v55 = vpop.permute.xlu0 %54
    %58 = vset.pattern.permute.xlu0 0
    %59 = vperm.xlu0 %58, %v34
    %v60 = vpop.permute.xlu0 %59
    %63 = vset.pattern.permute.xlu0 0
    %64 = vperm.xlu0 %63, %v35
    %v65 = vpop.permute.xlu0 %64
    %68 = vset.pattern.permute.xlu0 0
    %69 = vperm.xlu0 %68, %v36
    %v70 = vpop.permute.xlu0 %69
    %v73 = vlaneseq
    %v74 = vshrl.u32 %v73, 7
    %v75 = vsub.s32 0, %v74
    %v76 = vrot.slane %v29, %v75
    %v77 = vlaneseq
    %v78 = vshrl.u32 %v77, 7
    %v79 = vsub.s32 2, %v78
    %v80 = vrot.slane %v29, %v79
    %v83 = vlaneseq
    %v84 = vshrl.u32 %v83, 7
    %v85 = vsub.s32 0, %v84
    %v86 = vrot.slane %v76, %v85
    %v87 = vlaneseq
    %v88 = vshrl.u32 %v87, 7
    %v89 = vsub.s32 0, %v88
    %v90 = vrot.slane %v80, %v89
    %v91 = vmul.f32 %v40, %v86
    %v92 = vmul.f32 %v40, %v90
    %v93 = vmul.f32 %v45, %v86
    %v94 = vmul.f32 %v45, %v90
    %v95 = vmul.f32 %v50, %v86
    %v96 = vmul.f32 %v50, %v90
    %v97 = vmul.f32 %v55, %v86
    %v98 = vmul.f32 %v55, %v90
    %v99 = vmul.f32 %v60, %v86
    %v100 = vmul.f32 %v60, %v90
    %v101 = vmul.f32 %v65, %v86
    %v102 = vmul.f32 %v65, %v90
    %v103 = vmul.f32 %v70, %v86
    %v104 = vmul.f32 %v70, %v90
    %105 = vset.pattern.permute.xlu0 1
    %106 = vperm.xlu0 %105, %v30
    %v107 = vpop.permute.xlu0 %106
    %109 = vset.pattern.permute.xlu0 1
    %110 = vperm.xlu0 %109, %v31
    %v111 = vpop.permute.xlu0 %110
    %113 = vset.pattern.permute.xlu0 1
    %114 = vperm.xlu0 %113, %v32
    %v115 = vpop.permute.xlu0 %114
    %117 = vset.pattern.permute.xlu0 1
    %118 = vperm.xlu0 %117, %v33
    %v119 = vpop.permute.xlu0 %118
    %121 = vset.pattern.permute.xlu0 1
    %122 = vperm.xlu0 %121, %v34
    %v123 = vpop.permute.xlu0 %122
    %125 = vset.pattern.permute.xlu0 1
    %126 = vperm.xlu0 %125, %v35
    %v127 = vpop.permute.xlu0 %126
    %129 = vset.pattern.permute.xlu0 1
    %130 = vperm.xlu0 %129, %v36
    %v131 = vpop.permute.xlu0 %130
    %v133 = vlaneseq
    %v134 = vshrl.u32 %v133, 7
    %v135 = vsub.s32 1, %v134
    %v136 = vrot.slane %v29, %v135
    %v137 = vlaneseq
    %v138 = vshrl.u32 %v137, 7
    %v139 = vsub.s32 3, %v138
    %v140 = vrot.slane %v29, %v139
    %v143 = vlaneseq
    %v144 = vshrl.u32 %v143, 7
    %v145 = vsub.s32 1, %v144
    %v146 = vrot.slane %v136, %v145
    %v147 = vlaneseq
    %v148 = vshrl.u32 %v147, 7
    %v149 = vsub.s32 1, %v148
    %v150 = vrot.slane %v140, %v149
    %v151 = vmul.f32 %v107, %v146
    %v152 = vmul.f32 %v107, %v150
    %v153 = vmul.f32 %v111, %v146
    %v154 = vmul.f32 %v111, %v150
    %v155 = vmul.f32 %v115, %v146
    %v156 = vmul.f32 %v115, %v150
    %v157 = vmul.f32 %v119, %v146
    %v158 = vmul.f32 %v119, %v150
    %v159 = vmul.f32 %v123, %v146
    %v160 = vmul.f32 %v123, %v150
    %v161 = vmul.f32 %v127, %v146
    %v162 = vmul.f32 %v127, %v150
    %v163 = vmul.f32 %v131, %v146
    %v164 = vmul.f32 %v131, %v150
    %v165 = vadd.f32 %v91, %v151
    %v166 = vadd.f32 %v92, %v152
    %v167 = vadd.f32 %v93, %v153
    %v168 = vadd.f32 %v94, %v154
    %v169 = vadd.f32 %v95, %v155
    %v170 = vadd.f32 %v96, %v156
    %v171 = vadd.f32 %v97, %v157
    %v172 = vadd.f32 %v98, %v158
    %v173 = vadd.f32 %v99, %v159
    %v174 = vadd.f32 %v100, %v160
    %v175 = vadd.f32 %v101, %v161
    %v176 = vadd.f32 %v102, %v162
    %v177 = vadd.f32 %v103, %v163
    %v178 = vadd.f32 %v104, %v164
    %v179 = vld [vmem:[%s2] sm:$0xff]
    %v180 = vld [vmem:[%s2 + $0x8] sm:$0xff]
    %v181 = vld [vmem:[%s2 + $0x10] sm:$0xff]
    %v182 = vld [vmem:[%s2 + $0x18] sm:$0xff]
    %v183 = vld [vmem:[%s2 + $0x20] sm:$0xff]
    %v184 = vld [vmem:[%s2 + $0x28] sm:$0xff]
    %v185 = vld [vmem:[%s2 + $0x30] sm:$0x3]
    %187 = vset.pattern.permute.xlu0 0
    %188 = vperm.xlu0 %187, %v179
    %v189 = vpop.permute.xlu0 %188
    %192 = vset.pattern.permute.xlu0 0
    %193 = vperm.xlu0 %192, %v180
    %v194 = vpop.permute.xlu0 %193
    %197 = vset.pattern.permute.xlu0 0
    %198 = vperm.xlu0 %197, %v181
    %v199 = vpop.permute.xlu0 %198
    %202 = vset.pattern.permute.xlu0 0
    %203 = vperm.xlu0 %202, %v182
    %v204 = vpop.permute.xlu0 %203
    %207 = vset.pattern.permute.xlu0 0
    %208 = vperm.xlu0 %207, %v183
    %v209 = vpop.permute.xlu0 %208
    %212 = vset.pattern.permute.xlu0 0
    %213 = vperm.xlu0 %212, %v184
    %v214 = vpop.permute.xlu0 %213
    %217 = vset.pattern.permute.xlu0 0
    %218 = vperm.xlu0 %217, %v185
    %v219 = vpop.permute.xlu0 %218
    %v221 = vadd.f32 %v165, %v189
    %v222 = vadd.f32 %v166, %v189
    %v223 = vadd.f32 %v167, %v194
    %v224 = vadd.f32 %v168, %v194
    %v225 = vadd.f32 %v169, %v199
    %v226 = vadd.f32 %v170, %v199
    %v227 = vadd.f32 %v171, %v204
    %v228 = vadd.f32 %v172, %v204
    %v229 = vadd.f32 %v173, %v209
    %v230 = vadd.f32 %v174, %v209
    %v231 = vadd.f32 %v175, %v214
    %v232 = vadd.f32 %v176, %v214
    %v233 = vadd.f32 %v177, %v219
    %v234 = vadd.f32 %v178, %v219
    %v235 = vtanh.pop %v221
    %v236 = vtanh.pop %v222
    %v237 = vtanh.pop %v223
    %v238 = vtanh.pop %v224
    %v239 = vtanh.pop %v225
    %v240 = vtanh.pop %v226
    %v241 = vtanh.pop %v227
    %v242 = vtanh.pop %v228
    %v243 = vtanh.pop %v229
    %v244 = vtanh.pop %v230
    %v245 = vtanh.pop %v231
    %v246 = vtanh.pop %v232
    %v247 = vtanh.pop %v233
    %v248 = vtanh.pop %v234
    %v249 = vld [vmem:[%s3] sm:$0xff]
    %v250 = vld [vmem:[%s3 + $0x8] sm:$0xff]
    %v251 = vld [vmem:[%s3 + $0x10] sm:$0xff]
    %v252 = vld [vmem:[%s3 + $0x18] sm:$0xff]
    %v253 = vld [vmem:[%s3 + $0x20] sm:$0xff]
    %v254 = vld [vmem:[%s3 + $0x28] sm:$0xff]
    %v255 = vld [vmem:[%s3 + $0x30] sm:$0x3]
    %v256 = vld [vmem:[%s4] sm:$0xff]
    %v257 = vld [vmem:[%s4 + $0x8] sm:$0xff]
    %v258 = vld [vmem:[%s4 + $0x10] sm:$0xff]
    %v259 = vld [vmem:[%s4 + $0x18] sm:$0xff]
    %v260 = vld [vmem:[%s4 + $0x20] sm:$0xff]
    %v261 = vld [vmem:[%s4 + $0x28] sm:$0xff]
    %v262 = vld [vmem:[%s4 + $0x30] sm:$0x3]
    %264 = vset.pattern.permute.xlu0 0
    %265 = vperm.xlu0 %264, %v256
    %v266 = vpop.permute.xlu0 %265
    %269 = vset.pattern.permute.xlu0 0
    %270 = vperm.xlu0 %269, %v257
    %v271 = vpop.permute.xlu0 %270
    %274 = vset.pattern.permute.xlu0 0
    %275 = vperm.xlu0 %274, %v258
    %v276 = vpop.permute.xlu0 %275
    %279 = vset.pattern.permute.xlu0 0
    %280 = vperm.xlu0 %279, %v259
    %v281 = vpop.permute.xlu0 %280
    %284 = vset.pattern.permute.xlu0 0
    %285 = vperm.xlu0 %284, %v260
    %v286 = vpop.permute.xlu0 %285
    %289 = vset.pattern.permute.xlu0 0
    %290 = vperm.xlu0 %289, %v261
    %v291 = vpop.permute.xlu0 %290
    %294 = vset.pattern.permute.xlu0 0
    %295 = vperm.xlu0 %294, %v262
    %v296 = vpop.permute.xlu0 %295
    %vm298 = vcmask 408576
    %v300 = vsel %vm298, %v249, 0
    %v303 = vsel %vm298, %v250, 0
    %v306 = vsel %vm298, %v251, 0
    %v309 = vsel %vm298, %v252, 0
    %v312 = vsel %vm298, %v253, 0
    %v315 = vsel %vm298, %v254, 0
    %v318 = vsel %vm298, %v255, 0
    %vm320 = vcmask 1041408
    %v322 = vsel %vm320, %v247, 0
    %v325 = vsel %vm320, %v248, 0
    %327 = vmatprep.subr.mxu0 %v236
    %328 = vmatpush1.msra.mxu0 %v235
    %329 = vmatprep.subr.mxu0 %v238
    %330 = vmatpush1.msra.mxu0 %v237
    %331 = vmatprep.subr.mxu0 %v240
    %332 = vmatpush1.msra.mxu0 %v239
    %333 = vmatprep.subr.mxu0 %v242
    %334 = vmatpush1.msra.mxu0 %v241
    %335 = vmatprep.subr.mxu0 %v244
    %336 = vmatpush1.msra.mxu0 %v243
    %337 = vmatprep.subr.mxu0 %v246
    %338 = vmatpush1.msra.mxu0 %v245
    %339 = vmatprep.subr.mxu0 %v325
    %340 = vmatpush1.msra.mxu0 %v322
    %341 = vmatprep.subr.mxu0 0.0
    %342 = vmatpush1.msra.mxu0 0.0
    %343 = vmatprep.subr.mxu0 0.0
    %344 = vmatpush1.msra.mxu0 0.0
    %345 = vmatprep.subr.mxu0 0.0
    %346 = vmatpush1.msra.mxu0 0.0
    %347 = vmatprep.subr.mxu0 0.0
    %348 = vmatpush1.msra.mxu0 0.0
    %349 = vmatprep.subr.mxu0 0.0
    %350 = vmatpush1.msra.mxu0 0.0
    %351 = vmatprep.subr.mxu0 0.0
    %352 = vmatpush1.msra.mxu0 0.0
    %353 = vmatprep.subr.mxu0 0.0
    %354 = vmatpush1.msra.mxu0 0.0
    %355 = vmatprep.subr.mxu0 0.0
    %356 = vmatpush1.msra.mxu0 0.0
    %357 = vmatprep.subr.mxu0 0.0
    %358 = vmatpush1.msra.mxu0 0.0
    %359 = vmatprep.subr.mxu0 0.0
    %360 = vmatpush1.msra.mxu0 0.0
    %361 = vmatprep.subr.mxu0 0.0
    %362 = vmatpush1.msra.mxu0 0.0
    %363 = vmatprep.subr.mxu0 0.0
    %364 = vmatpush1.msra.mxu0 0.0
    %365 = vmatprep.subr.mxu0 0.0
    %366 = vmatpush1.msra.mxu0 0.0
    %367 = vmatprep.subr.mxu0 0.0
    %368 = vmatpush1.msra.mxu0 0.0
    %369 = vmatprep.subr.mxu0 0.0
    %370 = vmatpush1.msra.mxu0 0.0
    %371 = vmatprep.subr.mxu0 0.0
    %372 = vmatpush1.msra.mxu0 0.0
    %373 = vmatprep.subr.mxu0 0.0
    %374 = vmatpush1.msra.mxu0 0.0
    %375 = vmatprep.subr.mxu0 0.0
    %376 = vmatpush1.msra.mxu0 0.0
    %377 = vmatprep.subr.mxu0 0.0
    %378 = vmatpush1.msra.mxu0 0.0
    %379 = vmatprep.subr.mxu0 0.0
    %380 = vmatpush1.msra.mxu0 0.0
    %381 = vmatprep.subr.mxu0 0.0
    %382 = vmatpush1.msra.mxu0 0.0
    %383 = vmatprep.subr.mxu0 0.0
    %384 = vmatpush1.msra.mxu0 0.0
    %385 = vmatprep.subr.mxu0 0.0
    %386 = vmatpush1.msra.mxu0 0.0
    %387 = vmatprep.subr.mxu0 0.0
    %388 = vmatpush1.msra.mxu0 0.0
    %389 = vmatprep.subr.mxu0 0.0
    %390 = vmatpush1.msra.mxu0 0.0
    %391 = vmatprep.mubr.f32.mxu0 0.0
    %392 = vmatmul.mubr.f32.gmra.mrb[0].mxu0 %v300
    %v393 = vpop.f32.mrb[0].mxu0
    %v394 = vadd.f32 %v266, %v393
    %v395 = vpop.f32.mrb[0].mxu0
    %v396 = vadd.f32 %v266, %v395
    %397 = vmatprep.mubr.f32.mxu0 0.0
    %398 = vmatmul.mubr.f32.gmra.mrb[0].mxu0 %v303
    %v399 = vpop.f32.mrb[0].mxu0
    %v400 = vadd.f32 %v271, %v399
    %v401 = vpop.f32.mrb[0].mxu0
    %v402 = vadd.f32 %v271, %v401
    %403 = vmatprep.mubr.f32.mxu0 0.0
    %404 = vmatmul.mubr.f32.gmra.mrb[0].mxu0 %v306
    %v405 = vpop.f32.mrb[0].mxu0
    %v406 = vadd.f32 %v276, %v405
    %v407 = vpop.f32.mrb[0].mxu0
    %v408 = vadd.f32 %v276, %v407
    %409 = vmatprep.mubr.f32.mxu0 0.0
    %410 = vmatmul.mubr.f32.gmra.mrb[0].mxu0 %v309
    %v411 = vpop.f32.mrb[0].mxu0
    %v412 = vadd.f32 %v281, %v411
    %v413 = vpop.f32.mrb[0].mxu0
    %v414 = vadd.f32 %v281, %v413
    %415 = vmatprep.mubr.f32.mxu0 0.0
    %416 = vmatmul.mubr.f32.gmra.mrb[0].mxu0 %v312
    %v417 = vpop.f32.mrb[0].mxu0
    %v418 = vadd.f32 %v286, %v417
    %v419 = vpop.f32.mrb[0].mxu0
    %v420 = vadd.f32 %v286, %v419
    %421 = vmatprep.mubr.f32.mxu0 0.0
    %422 = vmatmul.mubr.f32.gmra.mrb[0].mxu0 %v315
    %v423 = vpop.f32.mrb[0].mxu0
    %v424 = vadd.f32 %v291, %v423
    %v425 = vpop.f32.mrb[0].mxu0
    %v426 = vadd.f32 %v291, %v425
    %427 = vmatprep.mubr.f32.mxu0 0.0
    %428 = vmatmul.mubr.f32.gmra.mrb[0].mxu0 %v318
    %v429 = vpop.f32.mrb[0].mxu0
    %v430 = vadd.f32 %v296, %v429
    %v431 = vpop.f32.mrb[0].mxu0
    %v432 = vadd.f32 %v296, %v431
    %433 = vdwg.mxu0
    %v434 = vtanh.pop %v394
    %v435 = vtanh.pop %v396
    %v436 = vtanh.pop %v400
    %v437 = vtanh.pop %v402
    %v438 = vtanh.pop %v406
    %v439 = vtanh.pop %v408
    %v440 = vtanh.pop %v412
    %v441 = vtanh.pop %v414
    %v442 = vtanh.pop %v418
    %v443 = vtanh.pop %v420
    %v444 = vtanh.pop %v424
    %v445 = vtanh.pop %v426
    %v446 = vtanh.pop %v430
    %v447 = vtanh.pop %v432
    %v448 = vld [vmem:[%s5] sm:$0x1]
    %v449 = vld [vmem:[#allocation2] sm:$0x1]
    %451 = vset.pattern.permute.xlu0 0
    %452 = vperm.xlu0 %451, %v449
    %v453 = vpop.permute.xlu0 %452
    %v455 = vlaneseq
    %v456 = vshrl.u32 %v455, 7
    %v457 = vsub.s32 0, %v456
    %v458 = vrot.slane %v453, %v457
    %v460 = vsel %vm298, %v448, 0
    %v463 = vsel %vm320, %v446, 0
    %v466 = vsel %vm320, %v447, 0
    %468 = vmatprep.subr.mxu0 %v435
    %469 = vmatpush1.msra.mxu0 %v434
    %470 = vmatprep.subr.mxu0 %v437
    %471 = vmatpush1.msra.mxu0 %v436
    %472 = vmatprep.subr.mxu0 %v439
    %473 = vmatpush1.msra.mxu0 %v438
    %474 = vmatprep.subr.mxu0 %v441
    %475 = vmatpush1.msra.mxu0 %v440
    %476 = vmatprep.subr.mxu0 %v443
    %477 = vmatpush1.msra.mxu0 %v442
    %478 = vmatprep.subr.mxu0 %v445
    %479 = vmatpush1.msra.mxu0 %v444
    %480 = vmatprep.subr.mxu0 %v466
    %481 = vmatpush1.msra.mxu0 %v463
    %482 = vmatprep.subr.mxu0 0.0
    %483 = vmatpush1.msra.mxu0 0.0
    %484 = vmatprep.subr.mxu0 0.0
    %485 = vmatpush1.msra.mxu0 0.0
    %486 = vmatprep.subr.mxu0 0.0
    %487 = vmatpush1.msra.mxu0 0.0
    %488 = vmatprep.subr.mxu0 0.0
    %489 = vmatpush1.msra.mxu0 0.0
    %490 = vmatprep.subr.mxu0 0.0
    %491 = vmatpush1.msra.mxu0 0.0
    %492 = vmatprep.subr.mxu0 0.0
    %493 = vmatpush1.msra.mxu0 0.0
    %494 = vmatprep.subr.mxu0 0.0
    %495 = vmatpush1.msra.mxu0 0.0
    %496 = vmatprep.subr.mxu0 0.0
    %497 = vmatpush1.msra.mxu0 0.0
    %498 = vmatprep.subr.mxu0 0.0
    %499 = vmatpush1.msra.mxu0 0.0
    %500 = vmatprep.subr.mxu0 0.0
    %501 = vmatpush1.msra.mxu0 0.0
    %502 = vmatprep.subr.mxu0 0.0
    %503 = vmatpush1.msra.mxu0 0.0
    %504 = vmatprep.subr.mxu0 0.0
    %505 = vmatpush1.msra.mxu0 0.0
    %506 = vmatprep.subr.mxu0 0.0
    %507 = vmatpush1.msra.mxu0 0.0
    %508 = vmatprep.subr.mxu0 0.0
    %509 = vmatpush1.msra.mxu0 0.0
    %510 = vmatprep.subr.mxu0 0.0
    %511 = vmatpush1.msra.mxu0 0.0
    %512 = vmatprep.subr.mxu0 0.0
    %513 = vmatpush1.msra.mxu0 0.0
    %514 = vmatprep.subr.mxu0 0.0
    %515 = vmatpush1.msra.mxu0 0.0
    %516 = vmatprep.subr.mxu0 0.0
    %517 = vmatpush1.msra.mxu0 0.0
    %518 = vmatprep.subr.mxu0 0.0
    %519 = vmatpush1.msra.mxu0 0.0
    %520 = vmatprep.subr.mxu0 0.0
    %521 = vmatpush1.msra.mxu0 0.0
    %522 = vmatprep.subr.mxu0 0.0
    %523 = vmatpush1.msra.mxu0 0.0
    %524 = vmatprep.subr.mxu0 0.0
    %525 = vmatpush1.msra.mxu0 0.0
    %526 = vmatprep.subr.mxu0 0.0
    %527 = vmatpush1.msra.mxu0 0.0
    %528 = vmatprep.subr.mxu0 0.0
    %529 = vmatpush1.msra.mxu0 0.0
    %530 = vmatprep.subr.mxu0 0.0
    %531 = vmatpush1.msra.mxu0 0.0
    %532 = vmatprep.mubr.f32.mxu0 0.0
    %533 = vmatmul.mubr.f32.gmra.mrb[0].mxu0 %v460
    %v534 = vpop.f32.mrb[0].mxu0
    %v535 = vadd.f32 %v458, %v534
    %v536 = vpop.f32.mrb[0].mxu0
    %v537 = vadd.f32 %v458, %v536
    %538 = vdwg.mxu0
    %v541 = vcombine.low %v535, %v537
    %v543 = vunpack.c.l.s4 1966171168
    %v544 = vunpack.c.0.s8 %v543
    %v545 = vlaneseq
    %v546 = vshrl.u32 %v545, 7
    %v547 = vsub.s32 %v544, %v546
    %v548 = vrot.slane %v541, %v547
    %v550 = vunpack.c.l.s4 1966171168
    %v551 = vunpack.c.0.s8 %v550
    %v552 = vlaneseq
    %v553 = vshrl.u32 %v552, 7
    %v554 = vsub.s32 %v551, %v553
    %v555 = vrot.slane %v548, %v554
    %v557 = vlaneseq
    %vm558 = vcmp.ge.s32.totalorder %v557, 0
    %vm559 = vcmp.lt.s32.totalorder %v557, 256
    %vm560 = vmand %vm558, %vm559
    %561 = vst.msk [vmem:[#allocation3] sm:$0x3] %vm560, %v555
    // Predicated region
    $region30: #{tpu_custom_call.1} parent=1 // pred_check
      _
    $region31: #{tpu_custom_call.1} parent=1 // pred_check_branch
      %563 = sbr.rel (0) target = $region33
    $region32: #{tpu_custom_call.1} parent=1 // pred_region
      %s565 = ssub.s32 32, 32
      %566 = vsyncadd [#allocation4], %s565
      %s568 = sshll.u32 [#allocation3], 4
      %s569 = int_to_ptr.vmem [resolvable:$true] %s568
      %571 = dma.vmem_to_hbm [thread:$0]  %s569, 32, %s7, [#allocation4]
    $region33: #{tpu_custom_call.1} parent=1 // pred_fallthru
      _
    // Predicated region
    $region34: #{tpu_custom_call.1} parent=1 // pred_check
      _
    $region35: #{tpu_custom_call.1} parent=1 // pred_check_branch
      %573 = sbr.rel (0) target = $region37
    $region36: #{tpu_custom_call.1} parent=1 // pred_region
      %574 = dma.done [#allocation4], 32
    $region37: #{tpu_custom_call.1} parent=1 // pred_fallthru
      _
    %575 = vsyncpa [#allocation4], 1

</llo_original>
